<compile_context>
chip_gen: v5e
topology: v5e:2x2
jax: 0.10.0
libtpu: 0.0.40
codegen_flags: <defaults>
</compile_context>

<pallas_src>
import jax
import jax.numpy as jnp
from jax import lax
from jax.experimental import pallas as pl
from jax.experimental.pallas import tpu as pltpu

_BN_EPS = 1e-5


# ---------------------------------------------------------------------------
# Kernels
# ---------------------------------------------------------------------------

def _linear_relu_f32out_kernel(x_ref, wt_ref, b_ref, o_ref):
    """grid = (M, N, K); K last ("arbitrary"). f32 output doubles as the
    accumulator (resident across K), so no scratch and no zero-fill pass."""
    k = pl.program_id(2)
    part = jnp.dot(x_ref[...], wt_ref[...], preferred_element_type=jnp.float32)

    @pl.when(k == 0)
    def _():
        o_ref[...] = part

    @pl.when(k > 0)
    def _():
        o_ref[...] += part

    @pl.when(k == pl.num_programs(2) - 1)
    def _():
        o_ref[...] = jnp.maximum(o_ref[...] + b_ref[...], 0.0)


def _linear_relu_acc_kernel(x_ref, wt_ref, b_ref, o_ref, acc_ref):
    """Same as above but with an f32 VMEM scratch accumulator (used when the
    output dtype is not f32)."""
    k = pl.program_id(2)
    part = jnp.dot(x_ref[...], wt_ref[...], preferred_element_type=jnp.float32)

    @pl.when(k == 0)
    def _():
        acc_ref[...] = part

    @pl.when(k > 0)
    def _():
        acc_ref[...] += part

    @pl.when(k == pl.num_programs(2) - 1)
    def _():
        o_ref[...] = jnp.maximum(acc_ref[...] + b_ref[...], 0.0).astype(o_ref.dtype)


def _linear_bn_relu_kernel(x_ref, wt_ref, g_ref, beta_ref, o_ref, acc_ref):
    """Single-pass BN path, grid = (N, K): the whole batch lives in one block
    so batch statistics are computed in-kernel (small/medium B fast path)."""
    k = pl.program_id(1)
    part = jnp.dot(x_ref[...], wt_ref[...], preferred_element_type=jnp.float32)

    @pl.when(k == 0)
    def _():
        acc_ref[...] = part

    @pl.when(k > 0)
    def _():
        acc_ref[...] += part

    @pl.when(k == pl.num_programs(1) - 1)
    def _():
        # Linear bias intentionally omitted: BatchNorm subtracts the batch
        # mean (cancels any per-feature constant) and variance is
        # shift-invariant, so the result is identical.
        z = acc_ref[...]
        mean = jnp.mean(z, axis=0, keepdims=True)
        c = z - mean                                   # two-pass variance
        var = jnp.mean(c * c, axis=0, keepdims=True)
        scale = g_ref[...] * lax.rsqrt(var + _BN_EPS)  # (1, tn)
        o_ref[...] = jnp.maximum(c * scale + beta_ref[...], 0.0).astype(o_ref.dtype)


def _linear_stats_kernel(x_ref, wt_ref, z_ref, tmean_ref, tm2_ref):
    """Two-pass BN, pass 1: grid = (M, N, K).  z = x @ W^T accumulated in the
    f32 output block; on the last K step, per-(M-tile, feature) mean and
    centered sum-of-squares are emitted for a stable Chan combine outside."""
    k = pl.program_id(2)
    part = jnp.dot(x_ref[...], wt_ref[...], preferred_element_type=jnp.float32)

    @pl.when(k == 0)
    def _():
        z_ref[...] = part

    @pl.when(k > 0)
    def _():
        z_ref[...] += part

    @pl.when(k == pl.num_programs(2) - 1)
    def _():
        z = z_ref[...]
        mu = jnp.mean(z, axis=0, keepdims=True)        # (1, tn)
        c = z - mu
        tmean_ref[...] = mu[None]                      # (1, 1, tn)
        tm2_ref[...] = jnp.sum(c * c, axis=0, keepdims=True)[None]


def _scale_shift_relu_kernel(z_ref, scale_ref, shift_ref, o_ref):
    """Two-pass BN, pass 2: grid = (M, N); fused affine + ReLU."""
    o_ref[...] = jnp.maximum(
        z_ref[...] * scale_ref[...] + shift_ref[...], 0.0).astype(o_ref.dtype)


# ---------------------------------------------------------------------------
# Tile selection / helpers
# ---------------------------------------------------------------------------

def _sublane_quantum(*dtypes):
    """bf16 packs 2 rows per sublane (int8/fp8 pack 4); keep second-minor
    tiles a multiple of the packing factor to avoid half-empty vregs and
    masked partial stores."""
    min_bytes = min(jnp.dtype(d).itemsize for d in dtypes)
    return max(8, 32 // min_bytes)


def _pick_tile(dim, want, quantum):
    """Largest tile <= `want` that divides `dim` and is a multiple of
    `quantum`; falls back to the full dim (always a legal block).
    # TODO(synk): pad in_dim/out_dim to multiples of 128 at init so this
    # fallback never produces a non-lane-aligned full-dim block."""
    if dim <= want:
        return dim
    t = (want // quantum) * quantum
    while t >= quantum:
        if dim % t == 0:
            return t
        t -= quantum
    return dim


def _halve(t, dim, quantum):
    h = t // 2
    if h >= quantum and h % quantum == 0 and dim % h == 0:
        return h
    return t


def _linear_need(tm, tn, tk, xs, ws, os_):
    # double-buffered x / W^T / out blocks + one f32 accumulator tile
    return 2 * tm * tk * xs + 2 * tk * tn * ws + 2 * tm * tn * os_ + tm * tn * 4


def _fit_linear_tiles(B, in_dim, out_dim, xs, ws, os_, budget,
                      tile_m, tile_n, tile_k, mq):
    """Pick (tm, tn, tk) against the VMEM budget."""
    # Weight-resident fast path: whole W^T as one block -> its block index is
    # constant over the grid, so it is DMA'd from HBM exactly once.
    if 2 * in_dim * out_dim * ws <= budget // 2:
        tk, tn = in_dim, out_dim
        tm = _pick_tile(B, tile_m, mq)
        while _linear_need(tm, tn, tk, xs, ws, os_) > budget:
            ntm = _halve(tm, B, mq)
            if ntm == tm:
                break
            tm = ntm
        if _linear_need(tm, tn, tk, xs, ws, os_) <= budget:
            return tm, tn, tk

    tm = _pick_tile(B, tile_m, mq)
    tn = _pick_tile(out_dim, tile_n, 128)
    tk = _pick_tile(in_dim, tile_k, 128)
    # Shrink K first (no extra HBM re-reads), then N, then M.
    for _ in range(24):
        if _linear_need(tm, tn, tk, xs, ws, os_) <= budget:
            break
        ntk = _halve(tk, in_dim, 128)
        if ntk != tk:
            tk = ntk
            continue
        ntn = _halve(tn, out_dim, 128)
        if ntn != tn:
            tn = ntn
            continue
        ntm = _halve(tm, B, mq)
        if ntm != tm:
            tm = ntm
            continue
        break
    return tm, tn, tk


def _w_spec(block_shape, index_map, w_buffers):
    if w_buffers is not None and w_buffers > 2:
        # Sweepable: a 3rd buffer hides one more step of exposed weight DMA in
        # the small-batch mem-bound regime (costs one extra (tk, tn) tile).
        return pl.BlockSpec(block_shape, index_map,
                            pipeline_mode=pl.Buffered(w_buffers))
    return pl.BlockSpec(block_shape, index_map)


def _cparams(sem, need_bytes):
    # Cover the working set with headroom; stays well under v7x's 64 MiB
    # physical VMEM while lifting v5e's 16 MiB scoped default.
    limit = min(max(int(need_bytes) + (4 << 20), 32 << 20), 56 << 20)
    return pltpu.CompilerParams(dimension_semantics=sem,
                                vmem_limit_bytes=limit)


# ---------------------------------------------------------------------------
# Forward wrapper
# ---------------------------------------------------------------------------

def block_forward(x, w_t, b, gamma=None, beta=None, *, bn=False,
                  out_dtype=jnp.float32,
                  tile_m=512, tile_n=512, tile_k=1024,
                  bn_tile_n=256, bn_mode="auto",
                  vmem_budget_bytes=24 * 1024 * 1024,
                  w_buffers=None):
    """Pallas forward for Block.

    x:   (B, in_dim)          -- any float dtype (bf16 ok, no wrapper casts)
    w_t: (in_dim, out_dim)    -- pre-transposed Linear weight (store bf16 at
                                 init if narrow weights are wanted)
    b:   (out_dim,)           -- Linear bias (exactly cancelled when bn=True)
    gamma, beta: (out_dim,)   -- BN affine (bn=True only)
    bn_mode: "auto" | "single" | "two_pass"
    """
    B, in_dim = x.shape
    k_dim, out_dim = w_t.shape
    assert k_dim == in_dim, "w_t must be (in_dim, out_dim)"

    xs = jnp.dtype(x.dtype).itemsize
    ws = jnp.dtype(w_t.dtype).itemsize
    os_ = jnp.dtype(out_dtype).itemsize
    mq = _sublane_quantum(x.dtype, out_dtype)
    budget = vmem_budget_bytes

    # ----------------------------- Linear + ReLU ---------------------------
    if not bn:
        tm, tn, tk = _fit_linear_tiles(B, in_dim, out_dim, xs, ws, os_,
                                       budget, tile_m, tile_n, tile_k, mq)
        gm, gn, gk = B // tm, out_dim // tn, in_dim // tk
        need = _linear_need(tm, tn, tk, xs, ws, os_)
        b2 = b.reshape(1, out_dim).astype(jnp.float32)

        f32_out = jnp.dtype(out_dtype) == jnp.dtype(jnp.float32)
        kernel = _linear_relu_f32out_kernel if f32_out else _linear_relu_acc_kernel
        scratch = [] if f32_out else [pltpu.VMEM((tm, tn), jnp.float32)]

        return pl.pallas_call(
            kernel,
            out_shape=jax.ShapeDtypeStruct((B, out_dim), out_dtype),
            grid_spec=pltpu.PrefetchScalarGridSpec(
                num_scalar_prefetch=0,
                grid=(gm, gn, gk),
                in_specs=[
                    pl.BlockSpec((tm, tk), lambda i, j, kk: (i, kk)),        # x
                    _w_spec((tk, tn), lambda i, j, kk: (kk, j), w_buffers),  # W^T
                    pl.BlockSpec((1, tn), lambda i, j, kk: (0, j)),          # bias
                ],
                out_specs=pl.BlockSpec((tm, tn), lambda i, j, kk: (i, j)),
                scratch_shapes=scratch,
            ),
            compiler_params=_cparams(("parallel", "parallel", "arbitrary"), need),
        )(x, w_t, b2)

    # ------------------------- Linear + BN + ReLU --------------------------
    assert gamma is not None and beta is not None, "bn=True needs gamma/beta"
    g2 = gamma.reshape(1, out_dim).astype(jnp.float32)
    beta2 = beta.reshape(1, out_dim).astype(jnp.float32)

    # Single-pass (whole batch resident) sizing.  Note: on v7x prefer a tn
    # giving gn a multiple of 2 so both TensorCores get N-tiles.
    tn1 = _pick_tile(out_dim, bn_tile_n, 128)
    tk1 = _pick_tile(in_dim, tile_k, 128)

    def _sp_need(tk_, tn_):
        return (2 * B * tk_ * xs + 2 * tk_ * tn_ * ws
                + 2 * B * tn_ * os_ + B * tn_ * 4 + 4 * tn_ * 4)

    for _ in range(8):
        if _sp_need(tk1, tn1) <= budget:
            break
        ntk = _halve(tk1, in_dim, 128)
        if ntk == tk1:
            break
        tk1 = ntk
    single_ok = _sp_need(tk1, tn1) <= budget
    use_single = (bn_mode == "single") or (bn_mode == "auto" and single_ok)

    if use_single:
        gn, gk = out_dim // tn1, in_dim // tk1
        return pl.pallas_call(
            _linear_bn_relu_kernel,
            out_shape=jax.ShapeDtypeStruct((B, out_dim), out_dtype),
            grid_spec=pltpu.PrefetchScalarGridSpec(
                num_scalar_prefetch=0,
                grid=(gn, gk),
                in_specs=[
                    pl.BlockSpec((B, tk1), lambda j, kk: (0, kk)),            # x
                    _w_spec((tk1, tn1), lambda j, kk: (kk, j), w_buffers),    # W^T
                    pl.BlockSpec((1, tn1), lambda j, kk: (0, j)),             # gamma
                    pl.BlockSpec((1, tn1), lambda j, kk: (0, j)),             # beta
                ],
                out_specs=pl.BlockSpec((B, tn1), lambda j, kk: (0, j)),
                scratch_shapes=[pltpu.VMEM((B, tn1), jnp.float32)],
            ),
            compiler_params=_cparams(("parallel", "arbitrary"),
                                     _sp_need(tk1, tn1)),
        )(x, w_t, g2, beta2)

    # Two-pass: tile M (no batch-size ceiling, x streamed exactly once).
    tm, tn, tk = _fit_linear_tiles(B, in_dim, out_dim, xs, ws, 4,
                                   budget, tile_m, tile_n, tile_k, mq)
    gm, gn, gk = B // tm, out_dim // tn, in_dim // tk
    p1_need = _linear_need(tm, tn, tk, xs, ws, 4)

    z, tmean3, tm23 = pl.pallas_call(
        _linear_stats_kernel,
        out_shape=(jax.ShapeDtypeStruct((B, out_dim), jnp.float32),
                   jax.ShapeDtypeStruct((gm, 1, out_dim), jnp.float32),
                   jax.ShapeDtypeStruct((gm, 1, out_dim), jnp.float32)),
        grid_spec=pltpu.PrefetchScalarGridSpec(
            num_scalar_prefetch=0,
            grid=(gm, gn, gk),
            in_specs=[
                pl.BlockSpec((tm, tk), lambda i, j, kk: (i, kk)),            # x
                _w_spec((tk, tn), lambda i, j, kk: (kk, j), w_buffers),      # W^T
            ],
            out_specs=[
                pl.BlockSpec((tm, tn), lambda i, j, kk: (i, j)),             # z
                pl.BlockSpec((1, 1, tn), lambda i, j, kk: (i, 0, j)),        # mean
                pl.BlockSpec((1, 1, tn), lambda i, j, kk: (i, 0, j)),        # M2
            ],
        ),
        compiler_params=_cparams(("parallel", "parallel", "arbitrary"), p1_need),
    )(x, w_t)

    # Combine per-tile (mean, M2) with Chan's parallel-variance formula —
    # tiny (gm, out_dim) ops, numerically stable (no E[z^2] - mean^2).
    tile_mean = tmean3[:, 0, :]
    tile_m2 = tm23[:, 0, :]
    mean = jnp.mean(tile_mean, axis=0, keepdims=True)
    m2 = (jnp.sum(tile_m2, axis=0, keepdims=True)
          + tm * jnp.sum(jnp.square(tile_mean - mean), axis=0, keepdims=True))
    var = m2 / B
    scale = g2 * lax.rsqrt(var + _BN_EPS)
    shift = beta2 - mean * scale

    p2_need = 2 * tm * tn * 4 + 2 * tm * tn * os_ + 8 * tn * 4
    return pl.pallas_call(
        _scale_shift_relu_kernel,
        out_shape=jax.ShapeDtypeStruct((B, out_dim), out_dtype),
        grid_spec=pltpu.PrefetchScalarGridSpec(
            num_scalar_prefetch=0,
            grid=(gm, gn),
            in_specs=[
                pl.BlockSpec((tm, tn), lambda i, j: (i, j)),                 # z
                pl.BlockSpec((1, tn), lambda i, j: (0, j)),                  # scale
                pl.BlockSpec((1, tn), lambda i, j: (0, j)),                  # shift
            ],
            out_specs=pl.BlockSpec((tm, tn), lambda i, j: (i, j)),
        ),
        compiler_params=_cparams(("parallel", "parallel"), p2_need),
    )(z, scale, shift)


# ---------------------------------------------------------------------------
# Init + reference
# ---------------------------------------------------------------------------

def init_block_params(key, in_dim, out_dim, bn=False, weight_dtype=jnp.float32):
    """Matches the PyTorch module __init__:
       - Linear weight: kaiming_normal_(fan_in, relu) == N(0, sqrt(2/in_dim)),
         stored pre-transposed as (in_dim, out_dim), optionally cast to
         bf16 ONCE here (not per forward call).
       - Linear bias: 0.  BatchNorm gamma: 1, beta: 0."""
    std = (2.0 / in_dim) ** 0.5
    w_t = (jax.random.normal(key, (in_dim, out_dim), dtype=jnp.float32)
           * std).astype(weight_dtype)
    params = {"w_t": w_t, "b": jnp.zeros((out_dim,), dtype=jnp.float32)}
    if bn:
        params["gamma"] = jnp.ones((out_dim,), dtype=jnp.float32)
        params["beta"] = jnp.zeros((out_dim,), dtype=jnp.float32)
    return params


def _reference(x, w_t, b, gamma=None, beta=None, bn=False):
    z = jnp.dot(x.astype(jnp.float32), w_t.astype(jnp.float32),
                precision=lax.Precision.HIGHEST) + b[None, :]
    if bn:
        mean = jnp.mean(z, axis=0, keepdims=True)
        var = jnp.mean((z - mean) ** 2, axis=0, keepdims=True)
        z = (z - mean) / jnp.sqrt(var + _BN_EPS)
        z = z * gamma[None, :] + beta[None, :]
    return jnp.maximum(z, 0.0)


# ---------------------------------------------------------------------------
# Self-test
# ---------------------------------------------------------------------------

if __name__ == "__main__":
    key = jax.random.PRNGKey(0)
    k_x, k_w1, k_w2, k_b = jax.random.split(key, 4)

    B, in_dim, out_dim = 32, 256, 256
    x = jax.random.normal(k_x, (B, in_dim), dtype=jnp.float32)
    TOL = dict(atol=2e-3, rtol=2e-3)

    # 1) bn=False, default tiles -> weight-resident fast path (single W DMA).
    p0 = init_block_params(k_w1, in_dim, out_dim, bn=False)
    r0 = _reference(x, p0["w_t"], p0["b"], bn=False)
    y0 = jax.block_until_ready(block_forward(x, p0["w_t"], p0["b"], bn=False))
    assert jnp.allclose(y0, r0, **TOL), "bn=False fast-path mismatch"

    # 2) bn=False, tiny budget -> tiled (M,N,K)=(2,2,2) grid path.
    y1 = jax.block_until_ready(block_forward(
        x, p0["w_t"], p0["b"], bn=False,
        tile_m=16, tile_n=128, tile_k=128, vmem_budget_bytes=256 * 1024))
    assert jnp.allclose(y1, r0, **TOL), "bn=False tiled-path mismatch"

    # 3) bn=True, auto -> single-pass whole-batch kernel.  Non-zero Linear
    #    bias verifies the exact bias/mean cancellation.
    p1 = init_block_params(k_w2, in_dim, out_dim, bn=True)
    b_nz = jax.random.normal(k_b, (out_dim,), dtype=jnp.float32) * 0.5
    r1 = _reference(x, p1["w_t"], b_nz, p1["gamma"], p1["beta"], bn=True)
    y2 = jax.block_until_ready(block_forward(
        x, p1["w_t"], b_nz, p1["gamma"], p1["beta"], bn=True))
    assert jnp.allclose(y2, r1, **TOL), "bn=True single-pass mismatch"

    # 4) bn=True, forced two-pass (tiled M) with a (2,2,2) pass-1 grid,
    #    exercising the Chan variance combine across M tiles.
    y3 = jax.block_until_ready(block_forward(
        x, p1["w_t"], b_nz, p1["gamma"], p1["beta"], bn=True,
        bn_mode="two_pass", tile_m=16, tile_n=128, tile_k=128,
        vmem_budget_bytes=256 * 1024))
    assert jnp.allclose(y3, r1, **TOL), "bn=True two-pass mismatch"

    # 5) bf16 weights + bf16 activations (cast once, outside the wrapper),
    #    f32 output -- loose tolerance.
    w_bf16 = p0["w_t"].astype(jnp.bfloat16)
    x_bf16 = x.astype(jnp.bfloat16)
    y4 = jax.block_until_ready(block_forward(x_bf16, w_bf16, p0["b"], bn=False))
    assert y4.dtype == jnp.float32
    assert jnp.allclose(y4, r0, atol=0.06, rtol=0.06), "bf16 mismatch"

    # 6) non-f32 output dtype -> scratch-accumulator kernel variant.
    y5 = jax.block_until_ready(block_forward(
        x, p0["w_t"], p0["b"], bn=False, out_dtype=jnp.bfloat16))
    assert y5.dtype == jnp.bfloat16
    assert jnp.allclose(y5.astype(jnp.float32), r0, atol=0.06, rtol=0.06), \
        "bf16-out mismatch"

    print("KERNEL_OK")
</pallas_src>

<mosaic_0001>
module attributes {stable_mosaic.version = 11 : i64} {
  func.func @_linear_relu_f32out_kernel(%arg0: i32, %arg1: i32, %arg2: i32, %arg3: memref<32x256xf32, #tpu.memory_space<vmem>>, %arg4: memref<256x256xf32, #tpu.memory_space<vmem>>, %arg5: memref<1x256xf32, #tpu.memory_space<vmem>>, %arg6: memref<32x256xf32, #tpu.memory_space<vmem>>) attributes {dimension_semantics = [#tpu.dimension_semantics<parallel>, #tpu.dimension_semantics<parallel>, #tpu.dimension_semantics<arbitrary>], iteration_bounds = array<i64: 1, 1, 1>, scalar_prefetch = 0 : i64, scratch_operands = 0 : i64, tpu.core_type = #tpu.core_type<tc>, window_params = [{transform_indices = @transform_0, window_bounds = array<i64: 32, 256>}, {transform_indices = @transform_1, window_bounds = array<i64: 256, 256>}, {transform_indices = @transform_2, window_bounds = array<i64: 1, 256>}, {transform_indices = @transform_3, window_bounds = array<i64: 32, 256>}]} {
    %c0 = arith.constant 0 : index
    %c0_0 = arith.constant 0 : index
    %0 = vector.load %arg3[%c0, %c0_0] : memref<32x256xf32, #tpu.memory_space<vmem>>, vector<32x256xf32>
    %c0_1 = arith.constant 0 : index
    %c0_2 = arith.constant 0 : index
    %1 = vector.load %arg4[%c0_1, %c0_2] : memref<256x256xf32, #tpu.memory_space<vmem>>, vector<256x256xf32>
    %cst = arith.constant dense<0.000000e+00> : vector<32x256xf32>
    %2 = tpu.matmul %0, %1, %cst {dimension_numbers = #tpu.dot_dimension_numbers<[1], [0], [0], [1], [0, 0, 1, 1], [], []>} : vector<32x256xf32>, vector<256x256xf32>, vector<32x256xf32> -> vector<32x256xf32>
    %c0_i32 = arith.constant 0 : i32
    %3 = arith.cmpi eq, %arg2, %c0_i32 : i32
    %4 = arith.extui %3 : i1 to i32
    %c0_i32_3 = arith.constant 0 : i32
    %5 = arith.cmpi ne, %4, %c0_i32_3 : i32
    scf.if %5 {
      %c0_8 = arith.constant 0 : index
      %c0_9 = arith.constant 0 : index
      %12 = vector.load %arg6[%c0_8, %c0_9] : memref<32x256xf32, #tpu.memory_space<vmem>>, vector<32x256xf32>
      tpu.vector_store %arg6[%c0_8, %c0_9], %2 {strides = array<i32>} : memref<32x256xf32, #tpu.memory_space<vmem>>, vector<32x256xf32>,
    } else {
    }
    %c0_i32_4 = arith.constant 0 : i32
    %6 = arith.cmpi sgt, %arg2, %c0_i32_4 : i32
    %7 = arith.extui %6 : i1 to i32
    %c0_i32_5 = arith.constant 0 : i32
    %8 = arith.cmpi ne, %7, %c0_i32_5 : i32
    scf.if %8 {
      %c0_8 = arith.constant 0 : index
      %c0_9 = arith.constant 0 : index
      %12 = vector.load %arg6[%c0_8, %c0_9] : memref<32x256xf32, #tpu.memory_space<vmem>>, vector<32x256xf32>
      %13 = arith.addf %12, %2 : vector<32x256xf32>
      %c0_10 = arith.constant 0 : index
      %c0_11 = arith.constant 0 : index
      %14 = vector.load %arg6[%c0_10, %c0_11] : memref<32x256xf32, #tpu.memory_space<vmem>>, vector<32x256xf32>
      tpu.vector_store %arg6[%c0_10, %c0_11], %13 {strides = array<i32>} : memref<32x256xf32, #tpu.memory_space<vmem>>, vector<32x256xf32>,
    } else {
    }
    %c0_i32_6 = arith.constant 0 : i32
    %9 = arith.cmpi eq, %arg2, %c0_i32_6 : i32
    %10 = arith.extui %9 : i1 to i32
    %c0_i32_7 = arith.constant 0 : i32
    %11 = arith.cmpi ne, %10, %c0_i32_7 : i32
    scf.if %11 {
      %c0_8 = arith.constant 0 : index
      %c0_9 = arith.constant 0 : index
      %12 = vector.load %arg6[%c0_8, %c0_9] : memref<32x256xf32, #tpu.memory_space<vmem>>, vector<32x256xf32>
      %c0_10 = arith.constant 0 : index
      %c0_11 = arith.constant 0 : index
      %13 = vector.load %arg5[%c0_10, %c0_11] : memref<1x256xf32, #tpu.memory_space<vmem>>, vector<1x256xf32>
      %14 = vector.broadcast %13 : vector<1x256xf32> to vector<32x256xf32>
      %15 = arith.addf %12, %14 : vector<32x256xf32>
      %cst_12 = arith.constant 0.000000e+00 : f32
      %16 = vector.broadcast %cst_12 : f32 to vector<32x256xf32>
      %17 = arith.maximumf %15, %16 : vector<32x256xf32>
      %c0_13 = arith.constant 0 : index
      %c0_14 = arith.constant 0 : index
      %18 = vector.load %arg6[%c0_13, %c0_14] : memref<32x256xf32, #tpu.memory_space<vmem>>, vector<32x256xf32>
      tpu.vector_store %arg6[%c0_13, %c0_14], %17 {strides = array<i32>} : memref<32x256xf32, #tpu.memory_space<vmem>>, vector<32x256xf32>,
    } else {
    }
    return
  }
  func.func @transform_0(%arg0: i32, %arg1: i32, %arg2: i32) -> (i32, i32) {
    %c0_i32 = arith.constant 0 : i32
    return %arg0, %arg2 : i32, i32
  }
  func.func @transform_1(%arg0: i32, %arg1: i32, %arg2: i32) -> (i32, i32) {
    %c0_i32 = arith.constant 0 : i32
    return %arg2, %arg1 : i32, i32
  }
  func.func @transform_2(%arg0: i32, %arg1: i32, %arg2: i32) -> (i32, i32) {
    %c0_i32 = arith.constant 0 : i32
    %c0_i32_0 = arith.constant 0 : i32
    return %c0_i32, %arg1 : i32, i32
  }
  func.func @transform_3(%arg0: i32, %arg1: i32, %arg2: i32) -> (i32, i32) {
    %c0_i32 = arith.constant 0 : i32
    return %arg0, %arg1 : i32, i32
  }
}

</mosaic_0001>

<llo_original>
// kernel: tpu_custom_call.1
$region0: #{tpu_custom_call.1}
  #allocation0 [shape = 'u32[]', space=smem, size = 0x4, offset = 0x4, fixed_abs, tag = 'smem constant byte address 0x4 - core index']
  #allocation1 [shape = 'u32[72,128]{1,0:T(1,128)}', space=vmem, size = 0x9000, scoped, tag = 'internal scratch']
  %s0 = inlined_call_operand.hbm [shape: f32[32,256], index: 0, kind: input, shape index: {}]
  %s1 = inlined_call_operand.hbm [shape: f32[256,256], index: 1, kind: input, shape index: {}]
  %s2 = inlined_call_operand.hbm [shape: f32[1,256], index: 2, kind: input, shape index: {}]
  %s3 = inlined_call_operand.hbm [shape: f32[32,256], index: 3, kind: output, shape index: {}]
  %s4 = sld [smem:[#allocation0]]
  $region46: #{tpu_custom_call.1} parent=0
    _
  %s6 = ssub.s32 1, %s4
  %s7 = scalar_select 0, %s6, %s4
  $region1: #{tpu_custom_call.1} parent=0
    #allocation2 [shape = 'u8[32768]{0}', space=vmem, size = 0x8000, scoped, tag = 'input window, operand 0, single buffered']
    #allocation3 [shape = 's32[1]{0}', space=sflag, size = 0x4, scoped, tag = 'scoped memory for tpu_custom_call.1']
    #allocation4 [shape = 's32[1]{0}', space=sflag, size = 0x4, scoped, tag = 'scoped memory for tpu_custom_call.1']
    #allocation5 [shape = 'u8[262144]{0}', space=vmem, size = 0x40000, scoped, tag = 'input window, operand 1, single buffered']
    #allocation6 [shape = 's32[1]{0}', space=sflag, size = 0x4, scoped, tag = 'scoped memory for tpu_custom_call.1']
    #allocation7 [shape = 'u8[1024]{0}', space=vmem, size = 0x400, scoped, tag = 'input window, operand 2, single buffered']
    #allocation8 [shape = 'u8[32768]{0}', space=vmem, size = 0x8000, scoped, tag = 'output window, operand 0, single buffered']
    %8 = vsyncpa [#allocation3], 0
    %9 = vsyncpa [#allocation6], 0
    %10 = vsyncpa [#allocation4], 0
    // Predicated region
    $region2: #{tpu_custom_call.1} parent=1 // pred_check
      _
    $region3: #{tpu_custom_call.1} parent=1 // pred_check_branch
      %12 = sbr.rel (0) target = $region5
    $region4: #{tpu_custom_call.1} parent=1 // pred_region
      %14 = vsyncadd [#allocation3], 0
      %s15 = sshll.u32 %s0, 4
      %s16 = int_to_ptr.hbm [resolvable:$true] %s15
      %s17 = sshll.u32 [#allocation2], 4
      %s18 = int_to_ptr.vmem [resolvable:$true] %s17
      %23 = dma.hbm_to_vmem [thread:$0]  %s16, 1024, %s18, [#allocation3], 256, 256, 16
    $region5: #{tpu_custom_call.1} parent=1 // pred_fallthru
      _
    // Predicated region
    $region6: #{tpu_custom_call.1} parent=1 // pred_check
      _
    $region7: #{tpu_custom_call.1} parent=1 // pred_check_branch
      %25 = sbr.rel (0) target = $region9
    $region8: #{tpu_custom_call.1} parent=1 // pred_region
      %27 = vsyncadd [#allocation6], 0
      %s28 = sshll.u32 %s1, 4
      %s29 = int_to_ptr.hbm [resolvable:$true] %s28
      %s30 = sshll.u32 [#allocation5], 4
      %s31 = int_to_ptr.vmem [resolvable:$true] %s30
      %36 = dma.hbm_to_vmem [thread:$0]  %s29, 8192, %s31, [#allocation6], 256, 256, 16
    $region9: #{tpu_custom_call.1} parent=1 // pred_fallthru
      _
    // Predicated region
    $region10: #{tpu_custom_call.1} parent=1 // pred_check
      _
    $region11: #{tpu_custom_call.1} parent=1 // pred_check_branch
      %38 = sbr.rel (0) target = $region13
    $region12: #{tpu_custom_call.1} parent=1 // pred_region
      %40 = vsyncadd [#allocation6], 0
      %s42 = sshll.u32 %s2, 4
      %s43 = int_to_ptr.hbm [resolvable:$true] %s42
      %s44 = sshll.u32 [#allocation7], 4
      %s45 = int_to_ptr.vmem [resolvable:$true] %s44
      %47 = dma.hbm_to_vmem [thread:$0]  %s43, 32, %s45, [#allocation6]
    $region13: #{tpu_custom_call.1} parent=1 // pred_fallthru
      _
    // Predicated region
    $region14: #{tpu_custom_call.1} parent=1 // pred_check
      _
    $region15: #{tpu_custom_call.1} parent=1 // pred_check_branch
      %49 = sbr.rel (0) target = $region17
    $region16: #{tpu_custom_call.1} parent=1 // pred_region
      %51 = dma.done [#allocation3], 1024
    $region17: #{tpu_custom_call.1} parent=1 // pred_fallthru
      _
    // Predicated region
    $region18: #{tpu_custom_call.1} parent=1 // pred_check
      _
    $region19: #{tpu_custom_call.1} parent=1 // pred_check_branch
      %53 = sbr.rel (0) target = $region21
    $region20: #{tpu_custom_call.1} parent=1 // pred_region
      %55 = dma.done [#allocation6], 8192
    $region21: #{tpu_custom_call.1} parent=1 // pred_fallthru
      _
    // Predicated region
    $region22: #{tpu_custom_call.1} parent=1 // pred_check
      _
    $region23: #{tpu_custom_call.1} parent=1 // pred_check_branch
      %57 = sbr.rel (0) target = $region25
    $region24: #{tpu_custom_call.1} parent=1 // pred_region
      %59 = dma.done [#allocation6], 32
    $region25: #{tpu_custom_call.1} parent=1 // pred_fallthru
      _
    %v60 = vld [vmem:[#allocation2] sm:$0xff]
    %v61 = vld [vmem:[#allocation2 + $0x8] sm:$0xff]
    %v62 = vld [vmem:[#allocation2 + $0x10] sm:$0xff]
    %v63 = vld [vmem:[#allocation2 + $0x18] sm:$0xff]
    %v64 = vld [vmem:[#allocation2 + $0x20] sm:$0xff]
    %v65 = vld [vmem:[#allocation2 + $0x28] sm:$0xff]
    %v66 = vld [vmem:[#allocation2 + $0x30] sm:$0xff]
    %v67 = vld [vmem:[#allocation2 + $0x38] sm:$0xff]
    %v68 = vld [vmem:[#allocation5] sm:$0xff]
    %v69 = vld [vmem:[#allocation5 + $0x8] sm:$0xff]
    %v70 = vld [vmem:[#allocation5 + $0x10] sm:$0xff]
    %v71 = vld [vmem:[#allocation5 + $0x18] sm:$0xff]
    %v72 = vld [vmem:[#allocation5 + $0x20] sm:$0xff]
    %v73 = vld [vmem:[#allocation5 + $0x28] sm:$0xff]
    %v74 = vld [vmem:[#allocation5 + $0x30] sm:$0xff]
    %v75 = vld [vmem:[#allocation5 + $0x38] sm:$0xff]
    %v76 = vld [vmem:[#allocation5 + $0x40] sm:$0xff]
    %v77 = vld [vmem:[#allocation5 + $0x48] sm:$0xff]
    %v78 = vld [vmem:[#allocation5 + $0x50] sm:$0xff]
    %v79 = vld [vmem:[#allocation5 + $0x58] sm:$0xff]
    %v80 = vld [vmem:[#allocation5 + $0x60] sm:$0xff]
    %v81 = vld [vmem:[#allocation5 + $0x68] sm:$0xff]
    %v82 = vld [vmem:[#allocation5 + $0x70] sm:$0xff]
    %v83 = vld [vmem:[#allocation5 + $0x78] sm:$0xff]
    %v84 = vld [vmem:[#allocation5 + $0x80] sm:$0xff]
    %v85 = vld [vmem:[#allocation5 + $0x88] sm:$0xff]
    %v86 = vld [vmem:[#allocation5 + $0x90] sm:$0xff]
    %v87 = vld [vmem:[#allocation5 + $0x98] sm:$0xff]
    %v88 = vld [vmem:[#allocation5 + $0xa0] sm:$0xff]
    %v89 = vld [vmem:[#allocation5 + $0xa8] sm:$0xff]
    %v90 = vld [vmem:[#allocation5 + $0xb0] sm:$0xff]
    %v91 = vld [vmem:[#allocation5 + $0xb8] sm:$0xff]
    %v92 = vld [vmem:[#allocation5 + $0xc0] sm:$0xff]
    %v93 = vld [vmem:[#allocation5 + $0xc8] sm:$0xff]
    %v94 = vld [vmem:[#allocation5 + $0xd0] sm:$0xff]
    %v95 = vld [vmem:[#allocation5 + $0xd8] sm:$0xff]
    %v96 = vld [vmem:[#allocation5 + $0xe0] sm:$0xff]
    %v97 = vld [vmem:[#allocation5 + $0xe8] sm:$0xff]
    %v98 = vld [vmem:[#allocation5 + $0xf0] sm:$0xff]
    %v99 = vld [vmem:[#allocation5 + $0xf8] sm:$0xff]
    %v100 = vld [vmem:[#allocation5 + $0x100] sm:$0xff]
    %v101 = vld [vmem:[#allocation5 + $0x108] sm:$0xff]
    %v102 = vld [vmem:[#allocation5 + $0x110] sm:$0xff]
    %v103 = vld [vmem:[#allocation5 + $0x118] sm:$0xff]
    %v104 = vld [vmem:[#allocation5 + $0x120] sm:$0xff]
    %v105 = vld [vmem:[#allocation5 + $0x128] sm:$0xff]
    %v106 = vld [vmem:[#allocation5 + $0x130] sm:$0xff]
    %v107 = vld [vmem:[#allocation5 + $0x138] sm:$0xff]
    %v108 = vld [vmem:[#allocation5 + $0x140] sm:$0xff]
    %v109 = vld [vmem:[#allocation5 + $0x148] sm:$0xff]
    %v110 = vld [vmem:[#allocation5 + $0x150] sm:$0xff]
    %v111 = vld [vmem:[#allocation5 + $0x158] sm:$0xff]
    %v112 = vld [vmem:[#allocation5 + $0x160] sm:$0xff]
    %v113 = vld [vmem:[#allocation5 + $0x168] sm:$0xff]
    %v114 = vld [vmem:[#allocation5 + $0x170] sm:$0xff]
    %v115 = vld [vmem:[#allocation5 + $0x178] sm:$0xff]
    %v116 = vld [vmem:[#allocation5 + $0x180] sm:$0xff]
    %v117 = vld [vmem:[#allocation5 + $0x188] sm:$0xff]
    %v118 = vld [vmem:[#allocation5 + $0x190] sm:$0xff]
    %v119 = vld [vmem:[#allocation5 + $0x198] sm:$0xff]
    %v120 = vld [vmem:[#allocation5 + $0x1a0] sm:$0xff]
    %v121 = vld [vmem:[#allocation5 + $0x1a8] sm:$0xff]
    %v122 = vld [vmem:[#allocation5 + $0x1b0] sm:$0xff]
    %v123 = vld [vmem:[#allocation5 + $0x1b8] sm:$0xff]
    %v124 = vld [vmem:[#allocation5 + $0x1c0] sm:$0xff]
    %v125 = vld [vmem:[#allocation5 + $0x1c8] sm:$0xff]
    %v126 = vld [vmem:[#allocation5 + $0x1d0] sm:$0xff]
    %v127 = vld [vmem:[#allocation5 + $0x1d8] sm:$0xff]
    %v128 = vld [vmem:[#allocation5 + $0x1e0] sm:$0xff]
    %v129 = vld [vmem:[#allocation5 + $0x1e8] sm:$0xff]
    %v130 = vld [vmem:[#allocation5 + $0x1f0] sm:$0xff]
    %v131 = vld [vmem:[#allocation5 + $0x1f8] sm:$0xff]
    %132 = vmatpush.msra.mxu0 %v98
    %133 = vmatpush.msra.mxu0 %v96
    %134 = vmatpush.msra.mxu0 %v94
    %135 = vmatpush.msra.mxu0 %v92
    %136 = vmatpush.msra.mxu0 %v90
    %137 = vmatpush.msra.mxu0 %v88
    %138 = vmatpush.msra.mxu0 %v86
    %139 = vmatpush.msra.mxu0 %v84
    %140 = vmatpush.msra.mxu0 %v82
    %141 = vmatpush.msra.mxu0 %v80
    %142 = vmatpush.msra.mxu0 %v78
    %143 = vmatpush.msra.mxu0 %v76
    %144 = vmatpush.msra.mxu0 %v74
    %145 = vmatpush.msra.mxu0 %v72
    %146 = vmatpush.msra.mxu0 %v70
    %147 = vmatpush.msra.mxu0 %v68
    %148 = vmatmul.f32.gmra.mxu0 %v60
    %v149 = vpop.f32.mrf.mxu0
    %v150 = vadd.f32 0.0, %v149
    %151 = vmatmul.f32.gmra.mxu0 %v62
    %v152 = vpop.f32.mrf.mxu0
    %v153 = vadd.f32 0.0, %v152
    %154 = vmatmul.f32.gmra.mxu0 %v64
    %v155 = vpop.f32.mrf.mxu0
    %v156 = vadd.f32 0.0, %v155
    %157 = vmatmul.f32.gmra.mxu0 %v66
    %v158 = vpop.f32.mrf.mxu0
    %v159 = vadd.f32 0.0, %v158
    %160 = vdwg.mxu0
    %161 = vmatpush.msra.mxu0 %v130
    %162 = vmatpush.msra.mxu0 %v128
    %163 = vmatpush.msra.mxu0 %v126
    %164 = vmatpush.msra.mxu0 %v124
    %165 = vmatpush.msra.mxu0 %v122
    %166 = vmatpush.msra.mxu0 %v120
    %167 = vmatpush.msra.mxu0 %v118
    %168 = vmatpush.msra.mxu0 %v116
    %169 = vmatpush.msra.mxu0 %v114
    %170 = vmatpush.msra.mxu0 %v112
    %171 = vmatpush.msra.mxu0 %v110
    %172 = vmatpush.msra.mxu0 %v108
    %173 = vmatpush.msra.mxu0 %v106
    %174 = vmatpush.msra.mxu0 %v104
    %175 = vmatpush.msra.mxu0 %v102
    %176 = vmatpush.msra.mxu0 %v100
    %177 = vmatmul.f32.gmra.mxu0 %v61
    %v178 = vpop.f32.mrf.mxu0
    %v179 = vadd.f32 %v150, %v178
    %180 = vmatmul.f32.gmra.mxu0 %v63
    %v181 = vpop.f32.mrf.mxu0
    %v182 = vadd.f32 %v153, %v181
    %183 = vmatmul.f32.gmra.mxu0 %v65
    %v184 = vpop.f32.mrf.mxu0
    %v185 = vadd.f32 %v156, %v184
    %186 = vmatmul.f32.gmra.mxu0 %v67
    %v187 = vpop.f32.mrf.mxu0
    %v188 = vadd.f32 %v159, %v187
    %189 = vdwg.mxu0
    %190 = vmatpush.msra.mxu0 %v99
    %191 = vmatpush.msra.mxu0 %v97
    %192 = vmatpush.msra.mxu0 %v95
    %193 = vmatpush.msra.mxu0 %v93
    %194 = vmatpush.msra.mxu0 %v91
    %195 = vmatpush.msra.mxu0 %v89
    %196 = vmatpush.msra.mxu0 %v87
    %197 = vmatpush.msra.mxu0 %v85
    %198 = vmatpush.msra.mxu0 %v83
    %199 = vmatpush.msra.mxu0 %v81
    %200 = vmatpush.msra.mxu0 %v79
    %201 = vmatpush.msra.mxu0 %v77
    %202 = vmatpush.msra.mxu0 %v75
    %203 = vmatpush.msra.mxu0 %v73
    %204 = vmatpush.msra.mxu0 %v71
    %205 = vmatpush.msra.mxu0 %v69
    %206 = vmatmul.f32.gmra.mxu0 %v60
    %v207 = vpop.f32.mrf.mxu0
    %v208 = vadd.f32 0.0, %v207
    %209 = vmatmul.f32.gmra.mxu0 %v62
    %v210 = vpop.f32.mrf.mxu0
    %v211 = vadd.f32 0.0, %v210
    %212 = vmatmul.f32.gmra.mxu0 %v64
    %v213 = vpop.f32.mrf.mxu0
    %v214 = vadd.f32 0.0, %v213
    %215 = vmatmul.f32.gmra.mxu0 %v66
    %v216 = vpop.f32.mrf.mxu0
    %v217 = vadd.f32 0.0, %v216
    %218 = vdwg.mxu0
    %219 = vmatpush.msra.mxu0 %v131
    %220 = vmatpush.msra.mxu0 %v129
    %221 = vmatpush.msra.mxu0 %v127
    %222 = vmatpush.msra.mxu0 %v125
    %223 = vmatpush.msra.mxu0 %v123
    %224 = vmatpush.msra.mxu0 %v121
    %225 = vmatpush.msra.mxu0 %v119
    %226 = vmatpush.msra.mxu0 %v117
    %227 = vmatpush.msra.mxu0 %v115
    %228 = vmatpush.msra.mxu0 %v113
    %229 = vmatpush.msra.mxu0 %v111
    %230 = vmatpush.msra.mxu0 %v109
    %231 = vmatpush.msra.mxu0 %v107
    %232 = vmatpush.msra.mxu0 %v105
    %233 = vmatpush.msra.mxu0 %v103
    %234 = vmatpush.msra.mxu0 %v101
    %235 = vmatmul.f32.gmra.mxu0 %v61
    %v236 = vpop.f32.mrf.mxu0
    %v237 = vadd.f32 %v208, %v236
    %238 = vmatmul.f32.gmra.mxu0 %v63
    %v239 = vpop.f32.mrf.mxu0
    %v240 = vadd.f32 %v211, %v239
    %241 = vmatmul.f32.gmra.mxu0 %v65
    %v242 = vpop.f32.mrf.mxu0
    %v243 = vadd.f32 %v214, %v242
    %244 = vmatmul.f32.gmra.mxu0 %v67
    %v245 = vpop.f32.mrf.mxu0
    %v246 = vadd.f32 %v217, %v245
    %247 = vdwg.mxu0
    %p248 = scmp.eq.s32.totalorder 0, 0
    // Predicated region
    $region26: #{tpu_custom_call.1} parent=1 // pred_check
      %p249 = pneg %p248
    $region27: #{tpu_custom_call.1} parent=1 // pred_check_branch
      %251 = sbr.rel (%p249) target = $region29
    $region28: #{tpu_custom_call.1} parent=1 // pred_region
      %252 = vst [vmem:[#allocation8] sm:$0xff] %v179
      %253 = vst [vmem:[#allocation8 + $0x8] sm:$0xff] %v237
      %254 = vst [vmem:[#allocation8 + $0x10] sm:$0xff] %v182
      %255 = vst [vmem:[#allocation8 + $0x18] sm:$0xff] %v240
      %256 = vst [vmem:[#allocation8 + $0x20] sm:$0xff] %v185
      %257 = vst [vmem:[#allocation8 + $0x28] sm:$0xff] %v243
      %258 = vst [vmem:[#allocation8 + $0x30] sm:$0xff] %v188
      %259 = vst [vmem:[#allocation8 + $0x38] sm:$0xff] %v246
    $region29: #{tpu_custom_call.1} parent=1 // pred_fallthru
      _
    %p260 = scmp.gt.s32.totalorder 0, 0
    // Predicated region
    $region30: #{tpu_custom_call.1} parent=1 // pred_check
      %p261 = pneg %p260
    $region31: #{tpu_custom_call.1} parent=1 // pred_check_branch
      %263 = sbr.rel (%p261) target = $region33
    $region32: #{tpu_custom_call.1} parent=1 // pred_region
      %v264 = vld [vmem:[#allocation8] sm:$0xff]
      %v265 = vld [vmem:[#allocation8 + $0x8] sm:$0xff]
      %v266 = vld [vmem:[#allocation8 + $0x10] sm:$0xff]
      %v267 = vld [vmem:[#allocation8 + $0x18] sm:$0xff]
      %v268 = vld [vmem:[#allocation8 + $0x20] sm:$0xff]
      %v269 = vld [vmem:[#allocation8 + $0x28] sm:$0xff]
      %v270 = vld [vmem:[#allocation8 + $0x30] sm:$0xff]
      %v271 = vld [vmem:[#allocation8 + $0x38] sm:$0xff]
      %v272 = vadd.f32 %v264, %v179
      %v273 = vadd.f32 %v265, %v237
      %v274 = vadd.f32 %v266, %v182
      %v275 = vadd.f32 %v267, %v240
      %v276 = vadd.f32 %v268, %v185
      %v277 = vadd.f32 %v269, %v243
      %v278 = vadd.f32 %v270, %v188
      %v279 = vadd.f32 %v271, %v246
      %280 = vst [vmem:[#allocation8] sm:$0xff] %v272
      %281 = vst [vmem:[#allocation8 + $0x8] sm:$0xff] %v273
      %282 = vst [vmem:[#allocation8 + $0x10] sm:$0xff] %v274
      %283 = vst [vmem:[#allocation8 + $0x18] sm:$0xff] %v275
      %284 = vst [vmem:[#allocation8 + $0x20] sm:$0xff] %v276
      %285 = vst [vmem:[#allocation8 + $0x28] sm:$0xff] %v277
      %286 = vst [vmem:[#allocation8 + $0x30] sm:$0xff] %v278
      %287 = vst [vmem:[#allocation8 + $0x38] sm:$0xff] %v279
    $region33: #{tpu_custom_call.1} parent=1 // pred_fallthru
      _
    // Predicated region
    $region34: #{tpu_custom_call.1} parent=1 // pred_check
      %p288 = pneg %p248
    $region35: #{tpu_custom_call.1} parent=1 // pred_check_branch
      %290 = sbr.rel (%p288) target = $region37
    $region36: #{tpu_custom_call.1} parent=1 // pred_region
      %v291 = vld [vmem:[#allocation8] sm:$0xff]
      %v292 = vld [vmem:[#allocation8 + $0x8] sm:$0xff]
      %v293 = vld [vmem:[#allocation8 + $0x10] sm:$0xff]
      %v294 = vld [vmem:[#allocation8 + $0x18] sm:$0xff]
      %v295 = vld [vmem:[#allocation8 + $0x20] sm:$0xff]
      %v296 = vld [vmem:[#allocation8 + $0x28] sm:$0xff]
      %v297 = vld [vmem:[#allocation8 + $0x30] sm:$0xff]
      %v298 = vld [vmem:[#allocation8 + $0x38] sm:$0xff]
      %v299 = vld [vmem:[#allocation7] sm:$0x3]
      %v301 = vperm.slane %v299, 0
      %v302 = vperm.slane %v299, 1
      %v305 = vadd.f32 %v291, %v301
      %v306 = vadd.f32 %v292, %v302
      %v307 = vadd.f32 %v293, %v301
      %v308 = vadd.f32 %v294, %v302
      %v309 = vadd.f32 %v295, %v301
      %v310 = vadd.f32 %v296, %v302
      %v311 = vadd.f32 %v297, %v301
      %v312 = vadd.f32 %v298, %v302
      %v313 = vmax.f32 %v305, 0.0
      %v314 = vmax.f32 %v306, 0.0
      %v315 = vmax.f32 %v307, 0.0
      %v316 = vmax.f32 %v308, 0.0
      %v317 = vmax.f32 %v309, 0.0
      %v318 = vmax.f32 %v310, 0.0
      %v319 = vmax.f32 %v311, 0.0
      %v320 = vmax.f32 %v312, 0.0
      %321 = vst [vmem:[#allocation8] sm:$0xff] %v313
      %322 = vst [vmem:[#allocation8 + $0x8] sm:$0xff] %v314
      %323 = vst [vmem:[#allocation8 + $0x10] sm:$0xff] %v315
      %324 = vst [vmem:[#allocation8 + $0x18] sm:$0xff] %v316
      %325 = vst [vmem:[#allocation8 + $0x20] sm:$0xff] %v317
      %326 = vst [vmem:[#allocation8 + $0x28] sm:$0xff] %v318
      %327 = vst [vmem:[#allocation8 + $0x30] sm:$0xff] %v319
      %328 = vst [vmem:[#allocation8 + $0x38] sm:$0xff] %v320
    $region37: #{tpu_custom_call.1} parent=1 // pred_fallthru
      _
    // Predicated region
    $region38: #{tpu_custom_call.1} parent=1 // pred_check
      _
    $region39: #{tpu_custom_call.1} parent=1 // pred_check_branch
      %330 = sbr.rel (0) target = $region41
    $region40: #{tpu_custom_call.1} parent=1 // pred_region
      %332 = vsyncadd [#allocation4], 0
      %s333 = sshll.u32 [#allocation8], 4
      %s334 = int_to_ptr.vmem [resolvable:$true] %s333
      %s335 = sshll.u32 %s3, 4
      %s336 = int_to_ptr.hbm [resolvable:$true] %s335
      %341 = dma.vmem_to_hbm [thread:$0]  %s334, 1024, %s336, [#allocation4], 256, 256, 16
    $region41: #{tpu_custom_call.1} parent=1 // pred_fallthru
      _
    // Predicated region
    $region42: #{tpu_custom_call.1} parent=1 // pred_check
      _
    $region43: #{tpu_custom_call.1} parent=1 // pred_check_branch
      %343 = sbr.rel (0) target = $region45
    $region44: #{tpu_custom_call.1} parent=1 // pred_region
      %345 = dma.done [#allocation4], 1024
    $region45: #{tpu_custom_call.1} parent=1 // pred_fallthru
      _
    %346 = vsyncpa [#allocation3], 1
    %347 = vsyncpa [#allocation6], 1
    %348 = vsyncpa [#allocation4], 1

</llo_original>
